<compile_context>
chip_gen: v6e
topology: v6e:2x2x1
jax: 0.10.0
libtpu: 0.0.40
codegen_flags: <defaults>
</compile_context>

<pallas_src>
import functools
import math

import jax
import jax.numpy as jnp
from jax import lax
from jax.experimental import pallas as pl
from jax.experimental.pallas import tpu as pltpu


def _round_up(x, m):
    return ((x + m - 1) // m) * m


def _flash_attention_kernel(q_ref, k_ref, v_ref, o_ref,
                            qs_ref, m_ref, l_ref, acc_ref,
                            *, dk, kv_len, tk, needs_mask, compute_dtype):
    ki = pl.program_id(2)

    @pl.when(ki == 0)
    def _init():
        # Reference divides by 1/sqrt(dk), i.e. multiplies by sqrt(dk).  Fold
        # the scale into Q ONCE per (group, q-tile) — hoisted out of the inner
        # K loop into a VMEM scratch held in the MXU compute dtype.
        scale = jnp.sqrt(jnp.float32(dk))
        qs_ref[...] = (q_ref[...].astype(jnp.float32) * scale).astype(compute_dtype)
        m_ref[...] = jnp.full_like(m_ref, -jnp.inf)
        l_ref[...] = jnp.zeros_like(l_ref)
        acc_ref[...] = jnp.zeros_like(acc_ref)

    q = qs_ref[...]                              # (G, tq, Dk), compute dtype
    k = k_ref[...].astype(compute_dtype)         # (G, Dk, tk)
    v = v_ref[...].astype(compute_dtype)         # (G, tk, Dv)

    # Q @ K^T: K is pre-transposed in the wrapper, so this is the natural
    # (M,K)@(K,N) MXU contraction with lane-dense K tiles; f32 accumulation.
    s = jnp.einsum('gqd,gdk->gqk', q, k, preferred_element_type=jnp.float32)

    if needs_mask:  # static Python bool — only traced when Sk was padded
        col = ki * tk + lax.broadcasted_iota(jnp.int32, (1, 1, s.shape[-1]), 2)
        s = jnp.where(col < kv_len, s, -1e30)

    # Online (flash) softmax update, all stats in f32.
    m_prev = m_ref[...]                                      # (G, tq, 1)
    m_new = jnp.maximum(m_prev, jnp.max(s, axis=-1, keepdims=True))
    alpha = jnp.exp(m_prev - m_new)                          # rescale old stats
    p = jnp.exp(s - m_new)                                   # (G, tq, tk), f32

    l_ref[...] = alpha * l_ref[...] + jnp.sum(p, axis=-1, keepdims=True)
    acc_ref[...] = alpha * acc_ref[...] + jnp.einsum(
        'gqk,gkd->gqd', p.astype(compute_dtype), v,
        preferred_element_type=jnp.float32)
    m_ref[...] = m_new

    @pl.when(ki == pl.num_programs(2) - 1)
    def _finalize():
        o_ref[...] = (acc_ref[...] / l_ref[...]).astype(o_ref.dtype)


def dot_product_attention(Q, K, V, dk, mask=None, *,
                          block_q=512, block_k=512,
                          compute_dtype=jnp.bfloat16,
                          group_budget_bytes=2 << 20):
    """Pallas implementation of DotProductAttention.forward (mask=None).

    compute_dtype: MXU operand dtype (default bf16; pass jnp.float32 or None
    to keep the input dtype for strict-precision callers).
    """
    assert mask is None, "mask unsupported (reference mask branch is broken)"
    assert Q.shape[:-2] == K.shape[:-2] == V.shape[:-2]
    assert Q.shape[-1] == K.shape[-1]
    assert K.shape[-2] == V.shape[-2]

    if compute_dtype is None:
        compute_dtype = Q.dtype

    lead = Q.shape[:-2]
    bh = math.prod(lead) if lead else 1
    Sq, Dk = Q.shape[-2], Q.shape[-1]
    Sk, Dv = K.shape[-2], V.shape[-1]

    q3 = Q.reshape(bh, Sq, Dk)
    k3 = K.reshape(bh, Sk, Dk)
    v3 = V.reshape(bh, Sk, Dv)

    # --- Tiling: keep tiles bounded; pad awkward sequence lengths instead of
    #     collapsing to one huge tile (respects the (8,128) layout rules too).
    block_q = max(8, block_q - block_q % 8)
    block_k = max(128, block_k - block_k % 128)
    if Sq <= block_q:
        tq, sq_pad = Sq, Sq
    else:
        tq, sq_pad = block_q, _round_up(Sq, block_q)
    if Sk <= block_k:
        tk, sk_pad = Sk, Sk
    else:
        tk, sk_pad = block_k, _round_up(Sk, block_k)
    needs_mask = sk_pad != Sk

    if sq_pad != Sq:
        q3 = jnp.pad(q3, ((0, 0), (0, sq_pad - Sq), (0, 0)))
    if sk_pad != Sk:
        k3 = jnp.pad(k3, ((0, 0), (0, sk_pad - Sk), (0, 0)))
        v3 = jnp.pad(v3, ((0, 0), (0, sk_pad - Sk), (0, 0)))

    # Pre-transpose K -> (bh, Dk, Sk): lane-dense along the key axis.
    k3t = jnp.swapaxes(k3, 1, 2)

    # --- Pack G (batch*head) pairs per grid step (amortize step overhead for
    #     tiny per-head problems) subject to a per-step VMEM budget.
    in_size = jnp.dtype(Q.dtype).itemsize
    out_size = in_size
    cdt_size = jnp.dtype(compute_dtype).itemsize
    per_pair = (in_size * (tq * Dk + Dk * tk + tk * Dv)   # q, k, v tiles
                + out_size * tq * Dv                       # output tile
                + 4 * (tq * Dv + 2 * tq)                   # f32 acc, m, l
                + cdt_size * tq * Dk)                      # scaled-Q scratch
    g_cap = max(1, group_budget_bytes // per_pair)
    G = 1
    for g in range(int(min(bh, g_cap)), 0, -1):
        if bh % g == 0:
            G = g
            break

    grid = (bh // G, sq_pad // tq, sk_pad // tk)

    # --- Generation-aware VMEM limit: stay well below physical capacity
    #     (64 MiB on v7x, 128 MiB on v5e/v6e) while covering our working set.
    try:
        vmem_cap = int(pltpu.get_tpu_info().vmem_capacity_bytes)
    except Exception:
        vmem_cap = 64 * 1024 * 1024  # conservative (v7x) fallback
    tiles_bytes = 2 * G * (in_size * (tq * Dk + Dk * tk + tk * Dv)
                           + out_size * tq * Dv)            # double-buffered
    scratch_bytes = G * (4 * (tq * Dv + 2 * tq) + cdt_size * tq * Dk)
    need = tiles_bytes + scratch_bytes + (4 << 20)
    vmem_limit = int(max(16 << 20,
                         min(max(need, 32 << 20), vmem_cap - (12 << 20))))

    kernel = functools.partial(
        _flash_attention_kernel, dk=dk, kv_len=Sk, tk=tk,
        needs_mask=needs_mask, compute_dtype=compute_dtype)

    out = pl.pallas_call(
        kernel,
        out_shape=jax.ShapeDtypeStruct((bh, sq_pad, Dv), Q.dtype),
        grid_spec=pltpu.PrefetchScalarGridSpec(
            num_scalar_prefetch=0,
            grid=grid,
            in_specs=[
                pl.BlockSpec((G, tq, Dk), lambda g, qi, ki: (g, qi, 0)),
                pl.BlockSpec((G, Dk, tk), lambda g, qi, ki: (g, 0, ki)),
                pl.BlockSpec((G, tk, Dv), lambda g, qi, ki: (g, ki, 0)),
            ],
            out_specs=pl.BlockSpec((G, tq, Dv), lambda g, qi, ki: (g, qi, 0)),
            scratch_shapes=[
                pltpu.VMEM((G, tq, Dk), compute_dtype),   # scaled Q (hoisted)
                pltpu.VMEM((G, tq, 1), jnp.float32),      # running max
                pltpu.VMEM((G, tq, 1), jnp.float32),      # running sum
                pltpu.VMEM((G, tq, Dv), jnp.float32),     # output accumulator
            ],
        ),
        compiler_params=pltpu.CompilerParams(
            dimension_semantics=("parallel", "parallel", "arbitrary"),
            vmem_limit_bytes=vmem_limit,
        ),
    )(q3, k3t, v3)

    if sq_pad != Sq:
        out = out[:, :Sq, :]
    return out.reshape(*lead, Sq, Dv)


# ----------------------------------------------------------------------------
# References for the self-test.
def _matched_reference(Q, K, V, dk, compute_dtype):
    """XLA reference with the SAME operand roundings as the kernel (f32 accum)."""
    f32 = jnp.float32
    scale = jnp.sqrt(f32(dk))
    qs = (Q.astype(f32) * scale).astype(compute_dtype)
    kc = K.astype(compute_dtype)
    vc = V.astype(compute_dtype)
    s = jnp.einsum('...qd,...kd->...qk', qs, kc, preferred_element_type=f32)
    p = jax.nn.softmax(s, axis=-1)
    o = jnp.einsum('...qk,...kd->...qd', p.astype(compute_dtype), vc,
                   preferred_element_type=f32)
    return o.astype(Q.dtype)


def _exact_reference(Q, K, V, dk):
    """Full-f32, highest-precision reference matching the PyTorch module."""
    f32 = jnp.float32
    scale = jnp.sqrt(f32(dk))
    s = jnp.einsum('...qd,...kd->...qk', Q.astype(f32), K.astype(f32),
                   preferred_element_type=f32,
                   precision=lax.Precision.HIGHEST) * scale
    p = jax.nn.softmax(s, axis=-1)
    o = jnp.einsum('...qk,...kd->...qd', p, V.astype(f32),
                   preferred_element_type=f32,
                   precision=lax.Precision.HIGHEST)
    return o.astype(Q.dtype)


if __name__ == "__main__":
    def _check(out, Q, K, V, dk):
        ref_m = _matched_reference(Q, K, V, dk, jnp.bfloat16)  # same op precision
        ref_x = _exact_reference(Q, K, V, dk)                  # semantic reference
        assert out.shape == ref_x.shape and out.dtype == Q.dtype
        assert jnp.allclose(out, ref_m, atol=2e-2, rtol=2e-2), "matched-precision mismatch"
        assert jnp.allclose(out, ref_x, atol=8e-2, rtol=8e-2), "f32-reference mismatch"

    root = jax.random.PRNGKey(0)

    # 1) Small per-head shape (exercises the (b,h)-packing path: one grid step).
    #    Moderate input magnitudes: the module MULTIPLIES scores by sqrt(dk)
    #    (faithful to the reference), so unit-variance inputs give a near
    #    one-hot softmax that amplifies rounding noise and makes comparisons
    #    meaningless; 0.25-scaled inputs keep the softmax well conditioned.
    B, H, S, DK, DV = 2, 2, 8, 32, 32
    k1, k2, k3 = jax.random.split(jax.random.fold_in(root, 1), 3)
    Q = 0.25 * jax.random.normal(k1, (B, H, S, DK), jnp.float32)
    K = 0.25 * jax.random.normal(k2, (B, H, S, DK), jnp.float32)
    V = jax.random.normal(k3, (B, H, S, DV), jnp.float32)
    out = jax.block_until_ready(dot_product_attention(Q, K, V, dk=DK))
    _check(out, Q, K, V, DK)

    # 2) Larger shape exercising the tiled Sq/Sk online-softmax path.
    B, H, SQ, SK, DK, DV = 1, 2, 256, 1024, 64, 64
    k1, k2, k3 = jax.random.split(jax.random.fold_in(root, 2), 3)
    Q = 0.15 * jax.random.normal(k1, (B, H, SQ, DK), jnp.float32)
    K = 0.15 * jax.random.normal(k2, (B, H, SK, DK), jnp.float32)
    V = jax.random.normal(k3, (B, H, SK, DV), jnp.float32)
    out = jax.block_until_ready(
        dot_product_attention(Q, K, V, dk=DK, block_q=128, block_k=256))
    _check(out, Q, K, V, DK)

    # 3) Awkward (non-multiple) sequence lengths: exercises padding + masking.
    B, H, SQ, SK, DK, DV = 1, 2, 200, 300, 64, 64
    k1, k2, k3 = jax.random.split(jax.random.fold_in(root, 3), 3)
    Q = 0.15 * jax.random.normal(k1, (B, H, SQ, DK), jnp.float32)
    K = 0.15 * jax.random.normal(k2, (B, H, SK, DK), jnp.float32)
    V = jax.random.normal(k3, (B, H, SK, DV), jnp.float32)
    out = jax.block_until_ready(
        dot_product_attention(Q, K, V, dk=DK, block_q=128, block_k=128))
    _check(out, Q, K, V, DK)

    print("KERNEL_OK")
</pallas_src>

<mosaic_0001>
module attributes {stable_mosaic.version = 11 : i64} {
  func.func @_flash_attention_kernel(%arg0: i32, %arg1: i32, %arg2: i32, %arg3: memref<4x8x32xf32, #tpu.memory_space<vmem>>, %arg4: memref<4x32x8xf32, #tpu.memory_space<vmem>>, %arg5: memref<4x8x32xf32, #tpu.memory_space<vmem>>, %arg6: memref<4x8x32xf32, #tpu.memory_space<vmem>>, %arg7: memref<4x8x32xbf16, #tpu.memory_space<vmem>>, %arg8: memref<4x8x1xf32, #tpu.memory_space<vmem>>, %arg9: memref<4x8x1xf32, #tpu.memory_space<vmem>>, %arg10: memref<4x8x32xf32, #tpu.memory_space<vmem>>) attributes {dimension_semantics = [#tpu.dimension_semantics<parallel>, #tpu.dimension_semantics<parallel>, #tpu.dimension_semantics<arbitrary>], iteration_bounds = array<i64: 1, 1, 1>, scalar_prefetch = 0 : i64, scratch_operands = 4 : i64, tpu.core_type = #tpu.core_type<tc>, window_params = [{transform_indices = @transform_0, window_bounds = array<i64: 4, 8, 32>}, {transform_indices = @transform_1, window_bounds = array<i64: 4, 32, 8>}, {transform_indices = @transform_2, window_bounds = array<i64: 4, 8, 32>}, {transform_indices = @transform_3, window_bounds = array<i64: 4, 8, 32>}]} {
    %c0_i32 = arith.constant 0 : i32
    %0 = arith.cmpi eq, %arg2, %c0_i32 : i32
    %1 = arith.extui %0 : i1 to i32
    %c0_i32_0 = arith.constant 0 : i32
    %2 = arith.cmpi ne, %1, %c0_i32_0 : i32
    scf.if %2 {
      %cst_32 = arith.constant 3.200000e+01 : f32
      %35 = math.sqrt %cst_32 : f32
      %c0_33 = arith.constant 0 : index
      %c0_34 = arith.constant 0 : index
      %c0_35 = arith.constant 0 : index
      %36 = vector.load %arg3[%c0_33, %c0_34, %c0_35] : memref<4x8x32xf32, #tpu.memory_space<vmem>>, vector<4x8x32xf32>
      %37 = vector.broadcast %35 : f32 to vector<4x8x32xf32>
      %38 = arith.mulf %36, %37 : vector<4x8x32xf32>
      %39 = arith.truncf %38 : vector<4x8x32xf32> to vector<4x8x32xbf16>
      %c0_36 = arith.constant 0 : index
      %c0_37 = arith.constant 0 : index
      %c0_38 = arith.constant 0 : index
      %40 = vector.load %arg7[%c0_36, %c0_37, %c0_38] : memref<4x8x32xbf16, #tpu.memory_space<vmem>>, vector<4x8x32xbf16>
      tpu.vector_store %arg7[%c0_36, %c0_37, %c0_38], %39 {strides = array<i32>} : memref<4x8x32xbf16, #tpu.memory_space<vmem>>, vector<4x8x32xbf16>,
      %cst_39 = arith.constant 0xFF800000 : f32
      %41 = vector.broadcast %cst_39 : f32 to vector<4x8x1xf32>
      %c0_40 = arith.constant 0 : index
      %c0_41 = arith.constant 0 : index
      %c0_42 = arith.constant 0 : index
      %42 = vector.load %arg8[%c0_40, %c0_41, %c0_42] : memref<4x8x1xf32, #tpu.memory_space<vmem>>, vector<4x8x1xf32>
      tpu.vector_store %arg8[%c0_40, %c0_41, %c0_42], %41 {strides = array<i32>} : memref<4x8x1xf32, #tpu.memory_space<vmem>>, vector<4x8x1xf32>,
      %cst_43 = arith.constant 0.000000e+00 : f32
      %43 = vector.broadcast %cst_43 : f32 to vector<4x8x1xf32>
      %c0_44 = arith.constant 0 : index
      %c0_45 = arith.constant 0 : index
      %c0_46 = arith.constant 0 : index
      %44 = vector.load %arg9[%c0_44, %c0_45, %c0_46] : memref<4x8x1xf32, #tpu.memory_space<vmem>>, vector<4x8x1xf32>
      tpu.vector_store %arg9[%c0_44, %c0_45, %c0_46], %43 {strides = array<i32>} : memref<4x8x1xf32, #tpu.memory_space<vmem>>, vector<4x8x1xf32>,
      %cst_47 = arith.constant 0.000000e+00 : f32
      %45 = vector.broadcast %cst_47 : f32 to vector<4x8x32xf32>
      %c0_48 = arith.constant 0 : index
      %c0_49 = arith.constant 0 : index
      %c0_50 = arith.constant 0 : index
      %46 = vector.load %arg10[%c0_48, %c0_49, %c0_50] : memref<4x8x32xf32, #tpu.memory_space<vmem>>, vector<4x8x32xf32>
      tpu.vector_store %arg10[%c0_48, %c0_49, %c0_50], %45 {strides = array<i32>} : memref<4x8x32xf32, #tpu.memory_space<vmem>>, vector<4x8x32xf32>,
    } else {
    }
    %c0 = arith.constant 0 : index
    %c0_1 = arith.constant 0 : index
    %c0_2 = arith.constant 0 : index
    %3 = vector.load %arg7[%c0, %c0_1, %c0_2] : memref<4x8x32xbf16, #tpu.memory_space<vmem>>, vector<4x8x32xbf16>
    %c0_3 = arith.constant 0 : index
    %c0_4 = arith.constant 0 : index
    %c0_5 = arith.constant 0 : index
    %4 = vector.load %arg4[%c0_3, %c0_4, %c0_5] : memref<4x32x8xf32, #tpu.memory_space<vmem>>, vector<4x32x8xf32>
    %5 = arith.truncf %4 : vector<4x32x8xf32> to vector<4x32x8xbf16>
    %c0_6 = arith.constant 0 : index
    %c0_7 = arith.constant 0 : index
    %c0_8 = arith.constant 0 : index
    %6 = vector.load %arg5[%c0_6, %c0_7, %c0_8] : memref<4x8x32xf32, #tpu.memory_space<vmem>>, vector<4x8x32xf32>
    %7 = arith.truncf %6 : vector<4x8x32xf32> to vector<4x8x32xbf16>
    "tpu.trace_start"() <{level = 10 : i32, message = "gqd,gdk->gqk"}> : () -> ()
    %cst = arith.constant dense<0.000000e+00> : vector<4x8x8xf32>
    %8 = tpu.matmul %3, %5, %cst {dimension_numbers = #tpu.dot_dimension_numbers<[2], [1], [1], [2], [0, 0, 0, 1, 1, 2], [0], [0]>} : vector<4x8x32xbf16>, vector<4x32x8xbf16>, vector<4x8x8xf32> -> vector<4x8x8xf32>
    "tpu.trace_stop"() : () -> ()
    %c0_9 = arith.constant 0 : index
    %c0_10 = arith.constant 0 : index
    %c0_11 = arith.constant 0 : index
    %9 = vector.load %arg8[%c0_9, %c0_10, %c0_11] : memref<4x8x1xf32, #tpu.memory_space<vmem>>, vector<4x8x1xf32>
    %cst_12 = arith.constant dense<0xFF800000> : vector<4x8xf32>
    %10 = vector.multi_reduction <maximumf>, %8, %cst_12 [2] : vector<4x8x8xf32> to vector<4x8xf32>
    %11 = vector.shape_cast %10 : vector<4x8xf32> to vector<4x8x1xf32>
    %12 = arith.maximumf %9, %11 : vector<4x8x1xf32>
    %13 = arith.subf %9, %12 : vector<4x8x1xf32>
    %14 = math.exp %13 : vector<4x8x1xf32>
    %15 = vector.broadcast %12 : vector<4x8x1xf32> to vector<4x8x8xf32>
    %16 = arith.subf %8, %15 : vector<4x8x8xf32>
    %17 = math.exp %16 : vector<4x8x8xf32>
    %c0_13 = arith.constant 0 : index
    %c0_14 = arith.constant 0 : index
    %c0_15 = arith.constant 0 : index
    %18 = vector.load %arg9[%c0_13, %c0_14, %c0_15] : memref<4x8x1xf32, #tpu.memory_space<vmem>>, vector<4x8x1xf32>
    %19 = arith.mulf %14, %18 : vector<4x8x1xf32>
    %cst_16 = arith.constant dense<0.000000e+00> : vector<4x8xf32>
    %20 = vector.multi_reduction <add>, %17, %cst_16 [2] : vector<4x8x8xf32> to vector<4x8xf32>
    %21 = vector.shape_cast %20 : vector<4x8xf32> to vector<4x8x1xf32>
    %22 = arith.addf %19, %21 : vector<4x8x1xf32>
    %c0_17 = arith.constant 0 : index
    %c0_18 = arith.constant 0 : index
    %c0_19 = arith.constant 0 : index
    %23 = vector.load %arg9[%c0_17, %c0_18, %c0_19] : memref<4x8x1xf32, #tpu.memory_space<vmem>>, vector<4x8x1xf32>
    tpu.vector_store %arg9[%c0_17, %c0_18, %c0_19], %22 {strides = array<i32>} : memref<4x8x1xf32, #tpu.memory_space<vmem>>, vector<4x8x1xf32>,
    %c0_20 = arith.constant 0 : index
    %c0_21 = arith.constant 0 : index
    %c0_22 = arith.constant 0 : index
    %24 = vector.load %arg10[%c0_20, %c0_21, %c0_22] : memref<4x8x32xf32, #tpu.memory_space<vmem>>, vector<4x8x32xf32>
    %25 = vector.broadcast %14 : vector<4x8x1xf32> to vector<4x8x32xf32>
    %26 = arith.mulf %25, %24 : vector<4x8x32xf32>
    %27 = arith.truncf %17 : vector<4x8x8xf32> to vector<4x8x8xbf16>
    "tpu.trace_start"() <{level = 10 : i32, message = "gqk,gkd->gqd"}> : () -> ()
    %cst_23 = arith.constant dense<0.000000e+00> : vector<4x8x32xf32>
    %28 = tpu.matmul %27, %7, %cst_23 {dimension_numbers = #tpu.dot_dimension_numbers<[2], [1], [1], [2], [0, 0, 0, 1, 1, 2], [0], [0]>} : vector<4x8x8xbf16>, vector<4x8x32xbf16>, vector<4x8x32xf32> -> vector<4x8x32xf32>
    "tpu.trace_stop"() : () -> ()
    %29 = arith.addf %26, %28 : vector<4x8x32xf32>
    %c0_24 = arith.constant 0 : index
    %c0_25 = arith.constant 0 : index
    %c0_26 = arith.constant 0 : index
    %30 = vector.load %arg10[%c0_24, %c0_25, %c0_26] : memref<4x8x32xf32, #tpu.memory_space<vmem>>, vector<4x8x32xf32>
    tpu.vector_store %arg10[%c0_24, %c0_25, %c0_26], %29 {strides = array<i32>} : memref<4x8x32xf32, #tpu.memory_space<vmem>>, vector<4x8x32xf32>,
    %c0_27 = arith.constant 0 : index
    %c0_28 = arith.constant 0 : index
    %c0_29 = arith.constant 0 : index
    %31 = vector.load %arg8[%c0_27, %c0_28, %c0_29] : memref<4x8x1xf32, #tpu.memory_space<vmem>>, vector<4x8x1xf32>
    tpu.vector_store %arg8[%c0_27, %c0_28, %c0_29], %12 {strides = array<i32>} : memref<4x8x1xf32, #tpu.memory_space<vmem>>, vector<4x8x1xf32>,
    %c0_i32_30 = arith.constant 0 : i32
    %32 = arith.cmpi eq, %arg2, %c0_i32_30 : i32
    %33 = arith.extui %32 : i1 to i32
    %c0_i32_31 = arith.constant 0 : i32
    %34 = arith.cmpi ne, %33, %c0_i32_31 : i32
    scf.if %34 {
      %c0_32 = arith.constant 0 : index
      %c0_33 = arith.constant 0 : index
      %c0_34 = arith.constant 0 : index
      %35 = vector.load %arg10[%c0_32, %c0_33, %c0_34] : memref<4x8x32xf32, #tpu.memory_space<vmem>>, vector<4x8x32xf32>
      %c0_35 = arith.constant 0 : index
      %c0_36 = arith.constant 0 : index
      %c0_37 = arith.constant 0 : index
      %36 = vector.load %arg9[%c0_35, %c0_36, %c0_37] : memref<4x8x1xf32, #tpu.memory_space<vmem>>, vector<4x8x1xf32>
      %37 = vector.broadcast %36 : vector<4x8x1xf32> to vector<4x8x32xf32>
      %38 = arith.divf %35, %37 : vector<4x8x32xf32>
      %c0_38 = arith.constant 0 : index
      %c0_39 = arith.constant 0 : index
      %c0_40 = arith.constant 0 : index
      %39 = vector.load %arg6[%c0_38, %c0_39, %c0_40] : memref<4x8x32xf32, #tpu.memory_space<vmem>>, vector<4x8x32xf32>
      tpu.vector_store %arg6[%c0_38, %c0_39, %c0_40], %38 {strides = array<i32>} : memref<4x8x32xf32, #tpu.memory_space<vmem>>, vector<4x8x32xf32>,
    } else {
    }
    return
  }
  func.func @transform_0(%arg0: i32, %arg1: i32, %arg2: i32) -> (i32, i32, i32) {
    %c0_i32 = arith.constant 0 : i32
    %c0_i32_0 = arith.constant 0 : i32
    return %arg0, %arg1, %c0_i32 : i32, i32, i32
  }
  func.func @transform_1(%arg0: i32, %arg1: i32, %arg2: i32) -> (i32, i32, i32) {
    %c0_i32 = arith.constant 0 : i32
    %c0_i32_0 = arith.constant 0 : i32
    return %arg0, %c0_i32, %arg2 : i32, i32, i32
  }
  func.func @transform_2(%arg0: i32, %arg1: i32, %arg2: i32) -> (i32, i32, i32) {
    %c0_i32 = arith.constant 0 : i32
    %c0_i32_0 = arith.constant 0 : i32
    return %arg0, %arg2, %c0_i32 : i32, i32, i32
  }
  func.func @transform_3(%arg0: i32, %arg1: i32, %arg2: i32) -> (i32, i32, i32) {
    %c0_i32 = arith.constant 0 : i32
    %c0_i32_0 = arith.constant 0 : i32
    return %arg0, %arg1, %c0_i32 : i32, i32, i32
  }
}

</mosaic_0001>

<llo_original>
// kernel: tpu_custom_call.1
$region0: #{tpu_custom_call.1}
  #allocation0 [shape = 'u32[]', space=smem, size = 0x4, offset = 0x4, fixed_abs, tag = 'smem constant byte address 0x4 - core index']
  #allocation1 [shape = 'u32[144,128]{1,0:T(1,128)}', space=vmem, size = 0x12000, scoped, tag = 'internal scratch']
  #allocation2 [shape = 'bf16[4,8,32]{2,1,0:T(8,128)(2,1)}', space=vmem, size = 0x2000, scoped, tag = 'scratch operand']
  #allocation3 [shape = 'f32[4,8,1]{2,1,0:T(8,128)}', space=vmem, size = 0x4000, scoped, tag = 'scratch operand']
  #allocation4 [shape = 'f32[4,8,1]{2,1,0:T(8,128)}', space=vmem, size = 0x4000, scoped, tag = 'scratch operand']
  #allocation5 [shape = 'f32[4,8,32]{2,1,0:T(8,128)}', space=vmem, size = 0x4000, scoped, tag = 'scratch operand']
  %s0 = inlined_call_operand.vmem [shape: f32[4,8,32], index: 0, kind: input, shape index: {}]
  %s1 = inlined_call_operand.vmem [shape: f32[4,32,8], index: 1, kind: input, shape index: {}]
  %s2 = inlined_call_operand.vmem [shape: f32[4,8,32], index: 2, kind: input, shape index: {}]
  %s3 = inlined_call_operand.hbm [shape: f32[4,8,32], index: 3, kind: output, shape index: {}]
  %s4 = sld [smem:[#allocation0]]
  $region30: #{tpu_custom_call.1} parent=0
    _
  %s6 = ssub.s32 1, %s4
  %s7 = scalar_select 0, %s6, %s4
  $region1: #{tpu_custom_call.1} parent=0
    #allocation6 [shape = 'u8[16384]{0}', space=vmem, size = 0x4000, scoped, tag = 'output window, operand 0, single buffered']
    #allocation7 [shape = 's32[1]{0}', space=sflag, size = 0x4, scoped, tag = 'scoped memory for tpu_custom_call.1']
    %8 = vsyncpa [#allocation7], 0
    // Predicated region
    $region2: #{tpu_custom_call.1} parent=1 // pred_check
      _
    $region3: #{tpu_custom_call.1} parent=1 // pred_check_branch
      %10 = sbr.rel (0) target = $region5
    $region4: #{tpu_custom_call.1} parent=1 // pred_region
      _
    $region5: #{tpu_custom_call.1} parent=1 // pred_fallthru
      _
    // Predicated region
    $region6: #{tpu_custom_call.1} parent=1 // pred_check
      _
    $region7: #{tpu_custom_call.1} parent=1 // pred_check_branch
      %12 = sbr.rel (0) target = $region9
    $region8: #{tpu_custom_call.1} parent=1 // pred_region
      _
    $region9: #{tpu_custom_call.1} parent=1 // pred_fallthru
      _
    // Predicated region
    $region10: #{tpu_custom_call.1} parent=1 // pred_check
      _
    $region11: #{tpu_custom_call.1} parent=1 // pred_check_branch
      %14 = sbr.rel (0) target = $region13
    $region12: #{tpu_custom_call.1} parent=1 // pred_region
      _
    $region13: #{tpu_custom_call.1} parent=1 // pred_fallthru
      _
    %p16 = scmp.eq.s32.totalorder 0, 0
    // Predicated region
    $region14: #{tpu_custom_call.1} parent=1 // pred_check
      %p17 = pneg %p16
    $region15: #{tpu_custom_call.1} parent=1 // pred_check_branch
      %19 = sbr.rel (%p17) target = $region17
    $region16: #{tpu_custom_call.1} parent=1 // pred_region
      %v20 = vld [vmem:[%s0] sm:$0xff]
      %v21 = vld [vmem:[%s0 + $0x8] sm:$0xff]
      %v22 = vld [vmem:[%s0 + $0x10] sm:$0xff]
      %v23 = vld [vmem:[%s0 + $0x18] sm:$0xff]
      %v24 = vmul.f32 %v20, 5.656854
      %v25 = vmul.f32 %v21, 5.656854
      %v26 = vmul.f32 %v22, 5.656854
      %v27 = vmul.f32 %v23, 5.656854
      %v28 = vpack.c.bf16 %v24, %v24
      %v29 = vpack.c.bf16 %v25, %v25
      %v30 = vpack.c.bf16 %v26, %v26
      %v31 = vpack.c.bf16 %v27, %v27
      %vm32 = vcmask 257024
      %33 = vst.msk [vmem:[#allocation2] sm:$0xf] %vm32, %v28
      %34 = vst.msk [vmem:[#allocation2 + $0x4] sm:$0xf] %vm32, %v29
      %35 = vst.msk [vmem:[#allocation2 + $0x8] sm:$0xf] %vm32, %v30
      %36 = vst.msk [vmem:[#allocation2 + $0xc] sm:$0xf] %vm32, %v31
      %vm37 = vcmask 7168
      %38 = vst.msk [vmem:[#allocation3] sm:$0xff] %vm37, -inf
      %39 = vst.msk [vmem:[#allocation3 + $0x8] sm:$0xff] %vm37, -inf
      %40 = vst.msk [vmem:[#allocation3 + $0x10] sm:$0xff] %vm37, -inf
      %41 = vst.msk [vmem:[#allocation3 + $0x18] sm:$0xff] %vm37, -inf
      %42 = vst.msk [vmem:[#allocation4] sm:$0xff] %vm37, 0.0
      %43 = vst.msk [vmem:[#allocation4 + $0x8] sm:$0xff] %vm37, 0.0
      %44 = vst.msk [vmem:[#allocation4 + $0x10] sm:$0xff] %vm37, 0.0
      %45 = vst.msk [vmem:[#allocation4 + $0x18] sm:$0xff] %vm37, 0.0
      %vm46 = vcmask 261120
      %47 = vst.msk [vmem:[#allocation5] sm:$0xff] %vm46, 0.0
      %48 = vst.msk [vmem:[#allocation5 + $0x8] sm:$0xff] %vm46, 0.0
      %49 = vst.msk [vmem:[#allocation5 + $0x10] sm:$0xff] %vm46, 0.0
      %50 = vst.msk [vmem:[#allocation5 + $0x18] sm:$0xff] %vm46, 0.0
    $region17: #{tpu_custom_call.1} parent=1 // pred_fallthru
      _
    %v51 = vld [vmem:[#allocation2] sm:$0xf]
    %v52 = vld [vmem:[#allocation2 + $0x4] sm:$0xf]
    %v53 = vld [vmem:[#allocation2 + $0x8] sm:$0xf]
    %v54 = vld [vmem:[#allocation2 + $0xc] sm:$0xf]
    %v55 = vld [vmem:[%s1] sm:$0xff]
    %v56 = vld [vmem:[%s1 + $0x8] sm:$0xff]
    %v57 = vld [vmem:[%s1 + $0x10] sm:$0xff]
    %v58 = vld [vmem:[%s1 + $0x18] sm:$0xff]
    %v59 = vld [vmem:[%s1 + $0x20] sm:$0xff]
    %v60 = vld [vmem:[%s1 + $0x28] sm:$0xff]
    %v61 = vld [vmem:[%s1 + $0x30] sm:$0xff]
    %v62 = vld [vmem:[%s1 + $0x38] sm:$0xff]
    %v63 = vld [vmem:[%s1 + $0x40] sm:$0xff]
    %v64 = vld [vmem:[%s1 + $0x48] sm:$0xff]
    %v65 = vld [vmem:[%s1 + $0x50] sm:$0xff]
    %v66 = vld [vmem:[%s1 + $0x58] sm:$0xff]
    %v67 = vld [vmem:[%s1 + $0x60] sm:$0xff]
    %v68 = vld [vmem:[%s1 + $0x68] sm:$0xff]
    %v69 = vld [vmem:[%s1 + $0x70] sm:$0xff]
    %v70 = vld [vmem:[%s1 + $0x78] sm:$0xff]
    %v71 = vpack.c.bf16 %v56, %v55
    %v72 = vpack.c.bf16 %v58, %v57
    %v73 = vpack.c.bf16 %v60, %v59
    %v74 = vpack.c.bf16 %v62, %v61
    %v75 = vpack.c.bf16 %v64, %v63
    %v76 = vpack.c.bf16 %v66, %v65
    %v77 = vpack.c.bf16 %v68, %v67
    %v78 = vpack.c.bf16 %v70, %v69
    %v79 = vld [vmem:[%s2] sm:$0xff]
    %v80 = vld [vmem:[%s2 + $0x8] sm:$0xff]
    %v81 = vld [vmem:[%s2 + $0x10] sm:$0xff]
    %v82 = vld [vmem:[%s2 + $0x18] sm:$0xff]
    %v83 = vpack.c.bf16 %v79, %v79
    %v84 = vpack.c.bf16 %v80, %v80
    %v85 = vpack.c.bf16 %v81, %v81
    %v86 = vpack.c.bf16 %v82, %v82
    %vm87 = vcmask 261120
    %v89 = vsel %vm87, %v51, 0
    %91 = vmatprep.subr.bf16.mxu0 0
    %92 = vmatpush1.bf16.msra.mxu0 0
    %93 = vmatprep.subr.bf16.mxu0 0
    %94 = vmatpush1.bf16.msra.mxu0 0
    %95 = vmatprep.subr.bf16.mxu0 0
    %96 = vmatpush1.bf16.msra.mxu0 0
    %97 = vmatprep.subr.bf16.mxu0 0
    %98 = vmatpush1.bf16.msra.mxu0 0
    %99 = vmatprep.subr.bf16.mxu0 0
    %100 = vmatpush1.bf16.msra.mxu0 0
    %101 = vmatprep.subr.bf16.mxu0 0
    %102 = vmatpush1.bf16.msra.mxu0 0
    %103 = vmatprep.subr.bf16.mxu0 0
    %104 = vmatpush1.bf16.msra.mxu0 %v72
    %105 = vmatprep.subr.bf16.mxu0 0
    %106 = vmatpush1.bf16.msra.mxu0 %v71
    %107 = vmatprep.subr.bf16.mxu0 0
    %108 = vmatpush2.bf16.msra.mxu0 0
    %109 = vmatprep.subr.bf16.mxu0 0
    %110 = vmatpush2.bf16.msra.mxu0 0
    %111 = vmatprep.subr.bf16.mxu0 0
    %112 = vmatpush2.bf16.msra.mxu0 0
    %113 = vmatprep.subr.bf16.mxu0 0
    %114 = vmatpush2.bf16.msra.mxu0 0
    %115 = vmatprep.subr.bf16.mxu0 0
    %116 = vmatpush2.bf16.msra.mxu0 0
    %117 = vmatprep.subr.bf16.mxu0 0
    %118 = vmatpush2.bf16.msra.mxu0 0
    %119 = vmatprep.subr.bf16.mxu0 0
    %120 = vmatpush2.bf16.msra.mxu0 0
    %121 = vmatprep.subr.bf16.mxu0 0
    %122 = vmatpush2.bf16.msra.mxu0 0
    %123 = vmatprep.mubr.bf16.mxu0 0
    %124 = vmatmul.mubr.bf16.gmra.mxu0 %v89
    %v125 = vpop.f32.mrf.mxu0
    %v126 = vadd.f32 0.0, %v125
    %v127 = vpop.f32.mrf.mxu0
    %v128 = vpop.f32.mrf.mxu0
    %v129 = vpop.f32.mrf.mxu0
    %130 = vdwg.mxu0
    %v132 = vsel %vm87, %v52, 0
    %134 = vmatprep.subr.bf16.mxu0 0
    %135 = vmatpush1.bf16.msra.mxu0 0
    %136 = vmatprep.subr.bf16.mxu0 0
    %137 = vmatpush1.bf16.msra.mxu0 0
    %138 = vmatprep.subr.bf16.mxu0 0
    %139 = vmatpush1.bf16.msra.mxu0 0
    %140 = vmatprep.subr.bf16.mxu0 0
    %141 = vmatpush1.bf16.msra.mxu0 0
    %142 = vmatprep.subr.bf16.mxu0 0
    %143 = vmatpush1.bf16.msra.mxu0 0
    %144 = vmatprep.subr.bf16.mxu0 0
    %145 = vmatpush1.bf16.msra.mxu0 0
    %146 = vmatprep.subr.bf16.mxu0 0
    %147 = vmatpush1.bf16.msra.mxu0 %v74
    %148 = vmatprep.subr.bf16.mxu0 0
    %149 = vmatpush1.bf16.msra.mxu0 %v73
    %150 = vmatprep.subr.bf16.mxu0 0
    %151 = vmatpush2.bf16.msra.mxu0 0
    %152 = vmatprep.subr.bf16.mxu0 0
    %153 = vmatpush2.bf16.msra.mxu0 0
    %154 = vmatprep.subr.bf16.mxu0 0
    %155 = vmatpush2.bf16.msra.mxu0 0
    %156 = vmatprep.subr.bf16.mxu0 0
    %157 = vmatpush2.bf16.msra.mxu0 0
    %158 = vmatprep.subr.bf16.mxu0 0
    %159 = vmatpush2.bf16.msra.mxu0 0
    %160 = vmatprep.subr.bf16.mxu0 0
    %161 = vmatpush2.bf16.msra.mxu0 0
    %162 = vmatprep.subr.bf16.mxu0 0
    %163 = vmatpush2.bf16.msra.mxu0 0
    %164 = vmatprep.subr.bf16.mxu0 0
    %165 = vmatpush2.bf16.msra.mxu0 0
    %166 = vmatprep.mubr.bf16.mxu0 0
    %167 = vmatmul.mubr.bf16.gmra.mxu0 %v132
    %v168 = vpop.f32.mrf.mxu0
    %v169 = vadd.f32 0.0, %v168
    %v170 = vpop.f32.mrf.mxu0
    %v171 = vpop.f32.mrf.mxu0
    %v172 = vpop.f32.mrf.mxu0
    %173 = vdwg.mxu0
    %v175 = vsel %vm87, %v53, 0
    %177 = vmatprep.subr.bf16.mxu0 0
    %178 = vmatpush1.bf16.msra.mxu0 0
    %179 = vmatprep.subr.bf16.mxu0 0
    %180 = vmatpush1.bf16.msra.mxu0 0
    %181 = vmatprep.subr.bf16.mxu0 0
    %182 = vmatpush1.bf16.msra.mxu0 0
    %183 = vmatprep.subr.bf16.mxu0 0
    %184 = vmatpush1.bf16.msra.mxu0 0
    %185 = vmatprep.subr.bf16.mxu0 0
    %186 = vmatpush1.bf16.msra.mxu0 0
    %187 = vmatprep.subr.bf16.mxu0 0
    %188 = vmatpush1.bf16.msra.mxu0 0
    %189 = vmatprep.subr.bf16.mxu0 0
    %190 = vmatpush1.bf16.msra.mxu0 %v76
    %191 = vmatprep.subr.bf16.mxu0 0
    %192 = vmatpush1.bf16.msra.mxu0 %v75
    %193 = vmatprep.subr.bf16.mxu0 0
    %194 = vmatpush2.bf16.msra.mxu0 0
    %195 = vmatprep.subr.bf16.mxu0 0
    %196 = vmatpush2.bf16.msra.mxu0 0
    %197 = vmatprep.subr.bf16.mxu0 0
    %198 = vmatpush2.bf16.msra.mxu0 0
    %199 = vmatprep.subr.bf16.mxu0 0
    %200 = vmatpush2.bf16.msra.mxu0 0
    %201 = vmatprep.subr.bf16.mxu0 0
    %202 = vmatpush2.bf16.msra.mxu0 0
    %203 = vmatprep.subr.bf16.mxu0 0
    %204 = vmatpush2.bf16.msra.mxu0 0
    %205 = vmatprep.subr.bf16.mxu0 0
    %206 = vmatpush2.bf16.msra.mxu0 0
    %207 = vmatprep.subr.bf16.mxu0 0
    %208 = vmatpush2.bf16.msra.mxu0 0
    %209 = vmatprep.mubr.bf16.mxu0 0
    %210 = vmatmul.mubr.bf16.gmra.mxu0 %v175
    %v211 = vpop.f32.mrf.mxu0
    %v212 = vadd.f32 0.0, %v211
    %v213 = vpop.f32.mrf.mxu0
    %v214 = vpop.f32.mrf.mxu0
    %v215 = vpop.f32.mrf.mxu0
    %216 = vdwg.mxu0
    %v218 = vsel %vm87, %v54, 0
    %220 = vmatprep.subr.bf16.mxu0 0
    %221 = vmatpush1.bf16.msra.mxu0 0
    %222 = vmatprep.subr.bf16.mxu0 0
    %223 = vmatpush1.bf16.msra.mxu0 0
    %224 = vmatprep.subr.bf16.mxu0 0
    %225 = vmatpush1.bf16.msra.mxu0 0
    %226 = vmatprep.subr.bf16.mxu0 0
    %227 = vmatpush1.bf16.msra.mxu0 0
    %228 = vmatprep.subr.bf16.mxu0 0
    %229 = vmatpush1.bf16.msra.mxu0 0
    %230 = vmatprep.subr.bf16.mxu0 0
    %231 = vmatpush1.bf16.msra.mxu0 0
    %232 = vmatprep.subr.bf16.mxu0 0
    %233 = vmatpush1.bf16.msra.mxu0 %v78
    %234 = vmatprep.subr.bf16.mxu0 0
    %235 = vmatpush1.bf16.msra.mxu0 %v77
    %236 = vmatprep.subr.bf16.mxu0 0
    %237 = vmatpush2.bf16.msra.mxu0 0
    %238 = vmatprep.subr.bf16.mxu0 0
    %239 = vmatpush2.bf16.msra.mxu0 0
    %240 = vmatprep.subr.bf16.mxu0 0
    %241 = vmatpush2.bf16.msra.mxu0 0
    %242 = vmatprep.subr.bf16.mxu0 0
    %243 = vmatpush2.bf16.msra.mxu0 0
    %244 = vmatprep.subr.bf16.mxu0 0
    %245 = vmatpush2.bf16.msra.mxu0 0
    %246 = vmatprep.subr.bf16.mxu0 0
    %247 = vmatpush2.bf16.msra.mxu0 0
    %248 = vmatprep.subr.bf16.mxu0 0
    %249 = vmatpush2.bf16.msra.mxu0 0
    %250 = vmatprep.subr.bf16.mxu0 0
    %251 = vmatpush2.bf16.msra.mxu0 0
    %252 = vmatprep.mubr.bf16.mxu0 0
    %253 = vmatmul.mubr.bf16.gmra.mxu0 %v218
    %v254 = vpop.f32.mrf.mxu0
    %v255 = vadd.f32 0.0, %v254
    %v256 = vpop.f32.mrf.mxu0
    %v257 = vpop.f32.mrf.mxu0
    %v258 = vpop.f32.mrf.mxu0
    %259 = vdwg.mxu0
    %v260 = vld [vmem:[#allocation3] sm:$0xff]
    %v261 = vld [vmem:[#allocation3 + $0x8] sm:$0xff]
    %v262 = vld [vmem:[#allocation3 + $0x10] sm:$0xff]
    %v263 = vld [vmem:[#allocation3 + $0x18] sm:$0xff]
    %vm264 = vcmask 64512
    %v265 = vsel %vm264, %v126, -inf
    %266 = vmax.xlane.f32.xlu0 %v265
    %v267 = vpop.xlane.xlu0 %266
    %v268 = vsel %vm264, %v169, -inf
    %269 = vmax.xlane.f32.xlu0 %v268
    %v270 = vpop.xlane.xlu0 %269
    %v271 = vsel %vm264, %v212, -inf
    %272 = vmax.xlane.f32.xlu0 %v271
    %v273 = vpop.xlane.xlu0 %272
    %v274 = vsel %vm264, %v255, -inf
    %275 = vmax.xlane.f32.xlu0 %v274
    %v276 = vpop.xlane.xlu0 %275
    %v277 = vmax.f32 %v260, %v267
    %v278 = vmax.f32 %v261, %v270
    %v279 = vmax.f32 %v262, %v273
    %v280 = vmax.f32 %v263, %v276
    %v281 = vsub.f32 %v260, %v277
    %v282 = vsub.f32 %v261, %v278
    %v283 = vsub.f32 %v262, %v279
    %v284 = vsub.f32 %v263, %v280
    %v285 = vmul.f32 %v281, 1.442695
    %v286 = vpow.pop %v285
    %v287 = vmul.f32 %v282, 1.442695
    %v288 = vpow.pop %v287
    %v289 = vmul.f32 %v283, 1.442695
    %v290 = vpow.pop %v289
    %v291 = vmul.f32 %v284, 1.442695
    %v292 = vpow.pop %v291
    %294 = vset.pattern.permute.xlu0 0
    %295 = vperm.xlu0 %294, %v277
    %v296 = vpop.permute.xlu0 %295
    %299 = vset.pattern.permute.xlu0 0
    %300 = vperm.xlu0 %299, %v278
    %v301 = vpop.permute.xlu0 %300
    %304 = vset.pattern.permute.xlu0 0
    %305 = vperm.xlu0 %304, %v279
    %v306 = vpop.permute.xlu0 %305
    %309 = vset.pattern.permute.xlu0 0
    %310 = vperm.xlu0 %309, %v280
    %v311 = vpop.permute.xlu0 %310
    %v313 = vsub.f32 %v126, %v296
    %v314 = vsub.f32 %v169, %v301
    %v315 = vsub.f32 %v212, %v306
    %v316 = vsub.f32 %v255, %v311
    %v317 = vmul.f32 %v313, 1.442695
    %v318 = vpow.pop %v317
    %v319 = vmul.f32 %v314, 1.442695
    %v320 = vpow.pop %v319
    %v321 = vmul.f32 %v315, 1.442695
    %v322 = vpow.pop %v321
    %v323 = vmul.f32 %v316, 1.442695
    %v324 = vpow.pop %v323
    %v325 = vld [vmem:[#allocation4] sm:$0xff]
    %v326 = vld [vmem:[#allocation4 + $0x8] sm:$0xff]
    %v327 = vld [vmem:[#allocation4 + $0x10] sm:$0xff]
    %v328 = vld [vmem:[#allocation4 + $0x18] sm:$0xff]
    %v329 = vmul.f32 %v286, %v325
    %v330 = vmul.f32 %v288, %v326
    %v331 = vmul.f32 %v290, %v327
    %v332 = vmul.f32 %v292, %v328
    %v333 = vsel %vm264, %v318, 0.0
    %334 = vadd.xlane.f32.xlu0 %v333
    %v335 = vpop.xlane.xlu0 %334
    %v336 = vsel %vm264, %v320, 0.0
    %337 = vadd.xlane.f32.xlu0 %v336
    %v338 = vpop.xlane.xlu0 %337
    %v339 = vsel %vm264, %v322, 0.0
    %340 = vadd.xlane.f32.xlu0 %v339
    %v341 = vpop.xlane.xlu0 %340
    %v342 = vsel %vm264, %v324, 0.0
    %343 = vadd.xlane.f32.xlu0 %v342
    %v344 = vpop.xlane.xlu0 %343
    %v345 = vadd.f32 %v329, %v335
    %v346 = vadd.f32 %v330, %v338
    %v347 = vadd.f32 %v331, %v341
    %v348 = vadd.f32 %v332, %v344
    %vm349 = vcmask 7168
    %350 = vst.msk [vmem:[#allocation4] sm:$0xff] %vm349, %v345
    %351 = vst.msk [vmem:[#allocation4 + $0x8] sm:$0xff] %vm349, %v346
    %352 = vst.msk [vmem:[#allocation4 + $0x10] sm:$0xff] %vm349, %v347
    %353 = vst.msk [vmem:[#allocation4 + $0x18] sm:$0xff] %vm349, %v348
    %v354 = vld [vmem:[#allocation5] sm:$0xff]
    %v355 = vld [vmem:[#allocation5 + $0x8] sm:$0xff]
    %v356 = vld [vmem:[#allocation5 + $0x10] sm:$0xff]
    %v357 = vld [vmem:[#allocation5 + $0x18] sm:$0xff]
    %359 = vset.pattern.permute.xlu0 0
    %360 = vperm.xlu0 %359, %v286
    %v361 = vpop.permute.xlu0 %360
    %364 = vset.pattern.permute.xlu0 0
    %365 = vperm.xlu0 %364, %v288
    %v366 = vpop.permute.xlu0 %365
    %369 = vset.pattern.permute.xlu0 0
    %370 = vperm.xlu0 %369, %v290
    %v371 = vpop.permute.xlu0 %370
    %374 = vset.pattern.permute.xlu0 0
    %375 = vperm.xlu0 %374, %v292
    %v376 = vpop.permute.xlu0 %375
    %v378 = vmul.f32 %v361, %v354
    %v379 = vmul.f32 %v366, %v355
    %v380 = vmul.f32 %v371, %v356
    %v381 = vmul.f32 %v376, %v357
    %v382 = vpack.c.bf16 %v318, %v318
    %v383 = vpack.c.bf16 %v320, %v320
    %v384 = vpack.c.bf16 %v322, %v322
    %v385 = vpack.c.bf16 %v324, %v324
    %v387 = vsel %vm264, %v382, 0
    %vm389 = vcmask 1043456
    %v391 = vsel %vm389, %v83, 0
    %393 = vmatprep.subr.bf16.mxu0 0
    %394 = vmatpush1.bf16.msra.mxu0 0
    %395 = vmatprep.subr.bf16.mxu0 0
    %396 = vmatpush1.bf16.msra.mxu0 0
    %397 = vmatprep.subr.bf16.mxu0 0
    %398 = vmatpush1.bf16.msra.mxu0 0
    %399 = vmatprep.subr.bf16.mxu0 0
    %400 = vmatpush1.bf16.msra.mxu0 0
    %401 = vmatprep.subr.bf16.mxu0 0
    %402 = vmatpush1.bf16.msra.mxu0 0
    %403 = vmatprep.subr.bf16.mxu0 0
    %404 = vmatpush1.bf16.msra.mxu0 0
    %405 = vmatprep.subr.bf16.mxu0 0
    %406 = vmatpush1.bf16.msra.mxu0 0
    %407 = vmatprep.subr.bf16.mxu0 0
    %408 = vmatpush1.bf16.msra.mxu0 %v391
    %409 = vmatprep.subr.bf16.mxu0 0
    %410 = vmatpush2.bf16.msra.mxu0 0
    %411 = vmatprep.subr.bf16.mxu0 0
    %412 = vmatpush2.bf16.msra.mxu0 0
    %413 = vmatprep.subr.bf16.mxu0 0
    %414 = vmatpush2.bf16.msra.mxu0 0
    %415 = vmatprep.subr.bf16.mxu0 0
    %416 = vmatpush2.bf16.msra.mxu0 0
    %417 = vmatprep.subr.bf16.mxu0 0
    %418 = vmatpush2.bf16.msra.mxu0 0
    %419 = vmatprep.subr.bf16.mxu0 0
    %420 = vmatpush2.bf16.msra.mxu0 0
    %421 = vmatprep.subr.bf16.mxu0 0
    %422 = vmatpush2.bf16.msra.mxu0 0
    %423 = vmatprep.subr.bf16.mxu0 0
    %424 = vmatpush2.bf16.msra.mxu0 0
    %425 = vmatprep.mubr.bf16.mxu0 0
    %426 = vmatmul.mubr.bf16.gmra.mxu0 %v387
    %v427 = vpop.f32.mrf.mxu0
    %v428 = vadd.f32 0.0, %v427
    %v429 = vpop.f32.mrf.mxu0
    %v430 = vpop.f32.mrf.mxu0
    %v431 = vpop.f32.mrf.mxu0
    %432 = vdwg.mxu0
    %v434 = vsel %vm264, %v383, 0
    %v437 = vsel %vm389, %v84, 0
    %439 = vmatprep.subr.bf16.mxu0 0
    %440 = vmatpush1.bf16.msra.mxu0 0
    %441 = vmatprep.subr.bf16.mxu0 0
    %442 = vmatpush1.bf16.msra.mxu0 0
    %443 = vmatprep.subr.bf16.mxu0 0
    %444 = vmatpush1.bf16.msra.mxu0 0
    %445 = vmatprep.subr.bf16.mxu0 0
    %446 = vmatpush1.bf16.msra.mxu0 0
    %447 = vmatprep.subr.bf16.mxu0 0
    %448 = vmatpush1.bf16.msra.mxu0 0
    %449 = vmatprep.subr.bf16.mxu0 0
    %450 = vmatpush1.bf16.msra.mxu0 0
    %451 = vmatprep.subr.bf16.mxu0 0
    %452 = vmatpush1.bf16.msra.mxu0 0
    %453 = vmatprep.subr.bf16.mxu0 0
    %454 = vmatpush1.bf16.msra.mxu0 %v437
    %455 = vmatprep.subr.bf16.mxu0 0
    %456 = vmatpush2.bf16.msra.mxu0 0
    %457 = vmatprep.subr.bf16.mxu0 0
    %458 = vmatpush2.bf16.msra.mxu0 0
    %459 = vmatprep.subr.bf16.mxu0 0
    %460 = vmatpush2.bf16.msra.mxu0 0
    %461 = vmatprep.subr.bf16.mxu0 0
    %462 = vmatpush2.bf16.msra.mxu0 0
    %463 = vmatprep.subr.bf16.mxu0 0
    %464 = vmatpush2.bf16.msra.mxu0 0
    %465 = vmatprep.subr.bf16.mxu0 0
    %466 = vmatpush2.bf16.msra.mxu0 0
    %467 = vmatprep.subr.bf16.mxu0 0
    %468 = vmatpush2.bf16.msra.mxu0 0
    %469 = vmatprep.subr.bf16.mxu0 0
    %470 = vmatpush2.bf16.msra.mxu0 0
    %471 = vmatprep.mubr.bf16.mxu0 0
    %472 = vmatmul.mubr.bf16.gmra.mxu0 %v434
    %v473 = vpop.f32.mrf.mxu0
    %v474 = vadd.f32 0.0, %v473
    %v475 = vpop.f32.mrf.mxu0
    %v476 = vpop.f32.mrf.mxu0
    %v477 = vpop.f32.mrf.mxu0
    %478 = vdwg.mxu0
    %v480 = vsel %vm264, %v384, 0
    %v483 = vsel %vm389, %v85, 0
    %485 = vmatprep.subr.bf16.mxu0 0
    %486 = vmatpush1.bf16.msra.mxu0 0
    %487 = vmatprep.subr.bf16.mxu0 0
    %488 = vmatpush1.bf16.msra.mxu0 0
    %489 = vmatprep.subr.bf16.mxu0 0
    %490 = vmatpush1.bf16.msra.mxu0 0
    %491 = vmatprep.subr.bf16.mxu0 0
    %492 = vmatpush1.bf16.msra.mxu0 0
    %493 = vmatprep.subr.bf16.mxu0 0
    %494 = vmatpush1.bf16.msra.mxu0 0
    %495 = vmatprep.subr.bf16.mxu0 0
    %496 = vmatpush1.bf16.msra.mxu0 0
    %497 = vmatprep.subr.bf16.mxu0 0
    %498 = vmatpush1.bf16.msra.mxu0 0
    %499 = vmatprep.subr.bf16.mxu0 0
    %500 = vmatpush1.bf16.msra.mxu0 %v483
    %501 = vmatprep.subr.bf16.mxu0 0
    %502 = vmatpush2.bf16.msra.mxu0 0
    %503 = vmatprep.subr.bf16.mxu0 0
    %504 = vmatpush2.bf16.msra.mxu0 0
    %505 = vmatprep.subr.bf16.mxu0 0
    %506 = vmatpush2.bf16.msra.mxu0 0
    %507 = vmatprep.subr.bf16.mxu0 0
    %508 = vmatpush2.bf16.msra.mxu0 0
    %509 = vmatprep.subr.bf16.mxu0 0
    %510 = vmatpush2.bf16.msra.mxu0 0
    %511 = vmatprep.subr.bf16.mxu0 0
    %512 = vmatpush2.bf16.msra.mxu0 0
    %513 = vmatprep.subr.bf16.mxu0 0
    %514 = vmatpush2.bf16.msra.mxu0 0
    %515 = vmatprep.subr.bf16.mxu0 0
    %516 = vmatpush2.bf16.msra.mxu0 0
    %517 = vmatprep.mubr.bf16.mxu0 0
    %518 = vmatmul.mubr.bf16.gmra.mxu0 %v480
    %v519 = vpop.f32.mrf.mxu0
    %v520 = vadd.f32 0.0, %v519
    %v521 = vpop.f32.mrf.mxu0
    %v522 = vpop.f32.mrf.mxu0
    %v523 = vpop.f32.mrf.mxu0
    %524 = vdwg.mxu0
    %v526 = vsel %vm264, %v385, 0
    %v529 = vsel %vm389, %v86, 0
    %531 = vmatprep.subr.bf16.mxu0 0
    %532 = vmatpush1.bf16.msra.mxu0 0
    %533 = vmatprep.subr.bf16.mxu0 0
    %534 = vmatpush1.bf16.msra.mxu0 0
    %535 = vmatprep.subr.bf16.mxu0 0
    %536 = vmatpush1.bf16.msra.mxu0 0
    %537 = vmatprep.subr.bf16.mxu0 0
    %538 = vmatpush1.bf16.msra.mxu0 0
    %539 = vmatprep.subr.bf16.mxu0 0
    %540 = vmatpush1.bf16.msra.mxu0 0
    %541 = vmatprep.subr.bf16.mxu0 0
    %542 = vmatpush1.bf16.msra.mxu0 0
    %543 = vmatprep.subr.bf16.mxu0 0
    %544 = vmatpush1.bf16.msra.mxu0 0
    %545 = vmatprep.subr.bf16.mxu0 0
    %546 = vmatpush1.bf16.msra.mxu0 %v529
    %547 = vmatprep.subr.bf16.mxu0 0
    %548 = vmatpush2.bf16.msra.mxu0 0
    %549 = vmatprep.subr.bf16.mxu0 0
    %550 = vmatpush2.bf16.msra.mxu0 0
    %551 = vmatprep.subr.bf16.mxu0 0
    %552 = vmatpush2.bf16.msra.mxu0 0
    %553 = vmatprep.subr.bf16.mxu0 0
    %554 = vmatpush2.bf16.msra.mxu0 0
    %555 = vmatprep.subr.bf16.mxu0 0
    %556 = vmatpush2.bf16.msra.mxu0 0
    %557 = vmatprep.subr.bf16.mxu0 0
    %558 = vmatpush2.bf16.msra.mxu0 0
    %559 = vmatprep.subr.bf16.mxu0 0
    %560 = vmatpush2.bf16.msra.mxu0 0
    %561 = vmatprep.subr.bf16.mxu0 0
    %562 = vmatpush2.bf16.msra.mxu0 0
    %563 = vmatprep.mubr.bf16.mxu0 0
    %564 = vmatmul.mubr.bf16.gmra.mxu0 %v526
    %v565 = vpop.f32.mrf.mxu0
    %v566 = vadd.f32 0.0, %v565
    %v567 = vpop.f32.mrf.mxu0
    %v568 = vpop.f32.mrf.mxu0
    %v569 = vpop.f32.mrf.mxu0
    %570 = vdwg.mxu0
    %v571 = vadd.f32 %v378, %v428
    %v572 = vadd.f32 %v379, %v474
    %v573 = vadd.f32 %v380, %v520
    %v574 = vadd.f32 %v381, %v566
    %575 = vst.msk [vmem:[#allocation5] sm:$0xff] %vm87, %v571
    %576 = vst.msk [vmem:[#allocation5 + $0x8] sm:$0xff] %vm87, %v572
    %577 = vst.msk [vmem:[#allocation5 + $0x10] sm:$0xff] %vm87, %v573
    %578 = vst.msk [vmem:[#allocation5 + $0x18] sm:$0xff] %vm87, %v574
    %579 = vst.msk [vmem:[#allocation3] sm:$0xff] %vm349, %v277
    %580 = vst.msk [vmem:[#allocation3 + $0x8] sm:$0xff] %vm349, %v278
    %581 = vst.msk [vmem:[#allocation3 + $0x10] sm:$0xff] %vm349, %v279
    %582 = vst.msk [vmem:[#allocation3 + $0x18] sm:$0xff] %vm349, %v280
    // Predicated region
    $region18: #{tpu_custom_call.1} parent=1 // pred_check
      %p583 = pneg %p16
    $region19: #{tpu_custom_call.1} parent=1 // pred_check_branch
      %585 = sbr.rel (%p583) target = $region21
    $region20: #{tpu_custom_call.1} parent=1 // pred_region
      %v586 = vld [vmem:[#allocation5] sm:$0xff]
      %v587 = vld [vmem:[#allocation5 + $0x8] sm:$0xff]
      %v588 = vld [vmem:[#allocation5 + $0x10] sm:$0xff]
      %v589 = vld [vmem:[#allocation5 + $0x18] sm:$0xff]
      %v590 = vld [vmem:[#allocation4] sm:$0xff]
      %v591 = vld [vmem:[#allocation4 + $0x8] sm:$0xff]
      %v592 = vld [vmem:[#allocation4 + $0x10] sm:$0xff]
      %v593 = vld [vmem:[#allocation4 + $0x18] sm:$0xff]
      %595 = vset.pattern.permute.xlu0 0
      %596 = vperm.xlu0 %595, %v590
      %v597 = vpop.permute.xlu0 %596
      %600 = vset.pattern.permute.xlu0 0
      %601 = vperm.xlu0 %600, %v591
      %v602 = vpop.permute.xlu0 %601
      %605 = vset.pattern.permute.xlu0 0
      %606 = vperm.xlu0 %605, %v592
      %v607 = vpop.permute.xlu0 %606
      %610 = vset.pattern.permute.xlu0 0
      %611 = vperm.xlu0 %610, %v593
      %v612 = vpop.permute.xlu0 %611
      %v614 = vrcp.pop %v597
      %v615 = vmul.f32 %v586, %v614
      %v616 = vrcp.pop %v602
      %v617 = vmul.f32 %v587, %v616
      %v618 = vrcp.pop %v607
      %v619 = vmul.f32 %v588, %v618
      %v620 = vrcp.pop %v612
      %v621 = vmul.f32 %v589, %v620
      %622 = vst.msk [vmem:[#allocation6] sm:$0xff] %vm87, %v615
      %623 = vst.msk [vmem:[#allocation6 + $0x8] sm:$0xff] %vm87, %v617
      %624 = vst.msk [vmem:[#allocation6 + $0x10] sm:$0xff] %vm87, %v619
      %625 = vst.msk [vmem:[#allocation6 + $0x18] sm:$0xff] %vm87, %v621
    $region21: #{tpu_custom_call.1} parent=1 // pred_fallthru
      _
    // Predicated region
    $region22: #{tpu_custom_call.1} parent=1 // pred_check
      _
    $region23: #{tpu_custom_call.1} parent=1 // pred_check_branch
      %627 = sbr.rel (0) target = $region25
    $region24: #{tpu_custom_call.1} parent=1 // pred_region
      %s629 = ssub.s32 512, 512
      %630 = vsyncadd [#allocation7], %s629
      %s631 = sshll.u32 [#allocation6], 4
      %s632 = int_to_ptr.vmem [resolvable:$true] %s631
      %637 = dma.vmem_to_hbm [thread:$0]  %s632, 512, %s3, [#allocation7], 128, 128, 8
    $region25: #{tpu_custom_call.1} parent=1 // pred_fallthru
      _
    // Predicated region
    $region26: #{tpu_custom_call.1} parent=1 // pred_check
      _
    $region27: #{tpu_custom_call.1} parent=1 // pred_check_branch
      %639 = sbr.rel (0) target = $region29
    $region28: #{tpu_custom_call.1} parent=1 // pred_region
      %640 = dma.done [#allocation7], 512
    $region29: #{tpu_custom_call.1} parent=1 // pred_fallthru
      _
    %641 = vsyncpa [#allocation7], 1

</llo_original>
